<compile_context>
chip_gen: v5e
topology: v5e:2x2
jax: 0.10.0
libtpu: 0.0.40
codegen_flags: <defaults>
</compile_context>

<pallas_src>
import functools
import math

import numpy as np
import jax
import jax.numpy as jnp
from jax.experimental import pallas as pl
from jax.experimental.pallas import tpu as pltpu


# --------------------------------------------------------------------------
# Phase 1: block-mask construction (tiled over N, one (1,H,W) block per step)
# --------------------------------------------------------------------------
def _shift_zero(a, s, axis):
    """Shift `a` by `s` along `axis` with zero fill (no wrap): out[i] = a[i-s]."""
    if s == 0:
        return a
    n = a.shape[axis]
    if abs(s) >= n:
        return jnp.zeros_like(a)
    zshape = list(a.shape)
    zshape[axis] = abs(s)
    z = jnp.zeros(zshape, a.dtype)
    idx = [slice(None)] * a.ndim
    if s > 0:
        idx[axis] = slice(0, n - s)
        return jnp.concatenate([z, a[tuple(idx)]], axis=axis)
    idx[axis] = slice(-s, n)
    return jnp.concatenate([a[tuple(idx)], z], axis=axis)


def _mask_kernel(bern_ref, m_ref, *, block_size):
    """bern_ref: (1,H,W) int8 Bernoulli(gamma); m_ref: (1,H,W) f32 block mask."""
    pad = block_size // 2
    bern = bern_ref[...].astype(jnp.float32)

    def window_pool(a, axis):
        # Zero-padded stride-1 max over window [i-pad, i-pad+block_size-1],
        # matching F.max_pool2d(k, stride=1, pad=k//2) (+ [:-1,:-1] crop for
        # even k).  Valid because a >= 0 so "zero padding" == zero-fill shifts.
        k = block_size
        if k <= 4:
            offs = range(-pad, pad + 1) if k % 2 else range(-pad, pad)
            out = a
            for d in offs:
                if d != 0:
                    out = jnp.maximum(out, _shift_zero(a, -d, axis))
            return out
        # log2-doubling running max: window [i, i+k-1] in ~ceil(log2 k) shifts.
        w, p = a, 1
        while 2 * p <= k:
            w = jnp.maximum(w, _shift_zero(w, -p, axis))
            p *= 2
        if p < k:
            w = jnp.maximum(w, _shift_zero(w, -(k - p), axis))
        return _shift_zero(w, pad, axis)     # re-center the window

    pooled = window_pool(window_pool(bern, 2), 1)
    m_ref[...] = 1.0 - pooled


# --------------------------------------------------------------------------
# Phase 2: memory-bound apply, lane-dense layout, tiled over (N, channel tiles)
# --------------------------------------------------------------------------
def _apply_kernel(x_ref, m_ref, o_ref):
    # x_ref: (1, c_blk, lane), m_ref: (1, 1, lane) -> broadcast over channels.
    o_ref[...] = (x_ref[...] * m_ref[...]).astype(o_ref.dtype)


def _choose_group(C, HW):
    """Fold g channels into the lane axis so the streamed last dim is 128-dense."""
    if HW % 128 == 0:
        return 1
    g = 128 // math.gcd(HW, 128)
    if C % g == 0:
        return g
    return 1


def _choose_c_tiling(Cg, lane, itemsize, target_bytes=4 << 20):
    """Channel-tile (multiple of 8) of ~target_bytes; pad channels only if needed."""
    bytes_per_row = lane * itemsize
    if Cg * bytes_per_row <= target_bytes or Cg <= 8:
        return Cg, 0                      # single block == full channel dim (legal)
    rows = max(8, min(Cg, target_bytes // bytes_per_row) // 8 * 8)
    for cb in range(rows, 7, -8):         # prefer an exact divisor (no padding)
        if Cg % cb == 0:
            return cb, 0
    return rows, (-Cg) % rows             # pad channels to a multiple of `rows`


@functools.partial(jax.jit, static_argnames=("block_size",))
def dropblock2d_pallas(x, seed, drop_prob, block_size):
    """x: (N, C, H, W). DropBlock2D forward in training mode."""
    N, C, H, W = x.shape
    HW = H * W
    block_size = int(block_size)
    itemsize = x.dtype.itemsize

    gamma = jnp.asarray(drop_prob, jnp.float32) / jnp.float32(block_size * block_size)
    key = jax.random.PRNGKey(seed)
    # Compact 1-byte Bernoulli draws (mask is shared across channels).
    bern = jax.random.bernoulli(key, gamma, (N, H, W)).astype(jnp.int8)

    # ---- phase 1: per-batch block mask (bounded VMEM, megacore parallel) ----
    m = pl.pallas_call(
        functools.partial(_mask_kernel, block_size=block_size),
        out_shape=jax.ShapeDtypeStruct((N, H, W), jnp.float32),
        grid=(N,),
        in_specs=[pl.BlockSpec((1, H, W), lambda n: (n, 0, 0))],
        out_specs=pl.BlockSpec((1, H, W), lambda n: (n, 0, 0)),
        compiler_params=pltpu.CompilerParams(dimension_semantics=("parallel",)),
    )(bern)

    # Global renormalisation scale: tiny XLA reduce over N*H*W, folded into the
    # mask so the streamed apply phase stays a single multiply per element.
    denom = jnp.sum(m)
    total = jnp.float32(m.size)
    # Guard denom == 0 (PyTorch reference would emit inf/NaN here).
    scale = jnp.where(denom > 0.0, total / jnp.maximum(denom, 1.0), 0.0)

    # ---- phase 2 layout: lane-dense (N, C//g, g*H*W) ----
    g = _choose_group(C, HW)
    Cg = C // g
    lane = g * HW
    x3 = x.reshape(N, Cg, lane)           # free for contiguous NCHW
    m3 = m.reshape(N, 1, HW) * scale
    if g > 1:
        m3 = jnp.tile(m3, (1, 1, g))      # mask repeats per channel in the group
    if itemsize < 4:
        m3 = m3.astype(x.dtype)           # halve mask DMA bytes / vreg pressure

    c_blk, pad_c = _choose_c_tiling(Cg, lane, itemsize)
    if pad_c:
        x3 = jnp.pad(x3, ((0, 0), (0, pad_c), (0, 0)))
    Cg_p = Cg + pad_c

    # TODO(synk): input_output_aliases on x3 would save an output allocation but
    # requires caller-side donation guarantees, so it is left off.
    out3 = pl.pallas_call(
        _apply_kernel,
        out_shape=jax.ShapeDtypeStruct((N, Cg_p, lane), x.dtype),
        grid=(N, Cg_p // c_blk),
        in_specs=[
            pl.BlockSpec((1, c_blk, lane), lambda n, c: (n, c, 0)),
            pl.BlockSpec((1, 1, lane), lambda n, c: (n, 0, 0)),
        ],
        out_specs=pl.BlockSpec((1, c_blk, lane), lambda n, c: (n, c, 0)),
        compiler_params=pltpu.CompilerParams(
            dimension_semantics=("parallel", "parallel"),
            vmem_limit_bytes=32 * 1024 * 1024),
    )(x3, m3)

    if pad_c:
        out3 = out3[:, :Cg, :]
    return out3.reshape(N, C, H, W)


# --------------------------------------------------------------------------
# Module-level wrappers (mirror the PyTorch classes)
# --------------------------------------------------------------------------
class DropBlock2D:
    """Pallas-backed DropBlock2D (the module LinearScheduler wraps)."""

    def __init__(self, drop_prob=0.0, block_size=3):
        self.drop_prob = float(drop_prob)
        self.block_size = int(block_size)
        self.training = True
        self._calls = 0   # fresh default seed per call so masks are not reused

    def __call__(self, x, seed=None):
        if (not self.training) or self.drop_prob == 0.0:
            return x
        if seed is None:
            seed = self._calls
        self._calls += 1
        return dropblock2d_pallas(x, seed=seed, drop_prob=self.drop_prob,
                                  block_size=self.block_size)


class LinearScheduler:
    """Faithful port of the PyTorch LinearScheduler (forward == dropblock(x))."""

    def __init__(self, dropblock, start_value, stop_value, nr_steps):
        self.dropblock = dropblock
        self.i = 0
        self.drop_values = np.linspace(start=start_value, stop=stop_value,
                                       num=nr_steps)

    def forward(self, x, seed=None):
        return self.dropblock(x, seed)

    __call__ = forward

    def step(self):
        if self.i < len(self.drop_values):
            self.dropblock.drop_prob = float(self.drop_values[self.i])
        self.i += 1


if __name__ == "__main__":
    key = jax.random.PRNGKey(0)
    x = jax.random.normal(key, (2, 4, 16, 16), dtype=jnp.float32)  # NCHW

    sched = LinearScheduler(DropBlock2D(drop_prob=0.0, block_size=3),
                            start_value=0.0, stop_value=0.25, nr_steps=5)
    # advance the linear schedule so drop_prob > 0 and the kernels actually run
    for _ in range(3):
        sched.step()

    out = sched(x, seed=0)
    out = jax.block_until_ready(out)
    assert out.shape == x.shape and out.dtype == x.dtype
    assert bool(jnp.all(jnp.isfinite(out)))

    # Second tiny check: bf16 input with a 7x7 map exercises the lane-dense
    # channel-grouping path and the low-precision mask cast.
    x2 = jax.random.normal(jax.random.PRNGKey(1), (2, 128, 7, 7),
                           dtype=jnp.bfloat16)
    out2 = jax.block_until_ready(sched(x2, seed=1))
    assert out2.shape == x2.shape and out2.dtype == x2.dtype
    assert bool(jnp.all(jnp.isfinite(out2.astype(jnp.float32))))

    print("KERNEL_OK")
</pallas_src>

<mosaic_0001>
module attributes {stable_mosaic.version = 11 : i64} {
  func.func @_mask_kernel(%arg0: i32, %arg1: memref<1x16x16xi8, #tpu.memory_space<vmem>>, %arg2: memref<1x16x16xf32, #tpu.memory_space<vmem>>) attributes {dimension_semantics = [#tpu.dimension_semantics<parallel>], iteration_bounds = array<i64: 2>, scalar_prefetch = 0 : i64, scratch_operands = 0 : i64, tpu.core_type = #tpu.core_type<tc>, window_params = [{transform_indices = @transform_0, window_bounds = array<i64: 1, 16, 16>}, {transform_indices = @transform_1, window_bounds = array<i64: 1, 16, 16>}]} {
    %c0 = arith.constant 0 : index
    %c0_0 = arith.constant 0 : index
    %c0_1 = arith.constant 0 : index
    %0 = vector.load %arg1[%c0, %c0_0, %c0_1] : memref<1x16x16xi8, #tpu.memory_space<vmem>>, vector<1x16x16xi8>
    %1 = arith.sitofp %0 : vector<1x16x16xi8> to vector<1x16x16xf32>
    %cst = arith.constant 0.000000e+00 : f32
    %2 = vector.broadcast %cst : f32 to vector<1x16x1xf32>
    %3 = vector.extract_strided_slice %1 {offsets = [0, 0, 0], sizes = [1, 16, 15], strides = [1, 1, 1]} : vector<1x16x16xf32> to vector<1x16x15xf32>
    %4 = tpu.concatenate %2, %3 in 2 : vector<1x16x1xf32>, vector<1x16x15xf32> -> vector<1x16x16xf32>
    %5 = arith.maximumf %1, %4 : vector<1x16x16xf32>
    %cst_2 = arith.constant 0.000000e+00 : f32
    %6 = vector.broadcast %cst_2 : f32 to vector<1x16x1xf32>
    %7 = vector.extract_strided_slice %1 {offsets = [0, 0, 1], sizes = [1, 16, 15], strides = [1, 1, 1]} : vector<1x16x16xf32> to vector<1x16x15xf32>
    %8 = tpu.concatenate %7, %6 in 2 : vector<1x16x15xf32>, vector<1x16x1xf32> -> vector<1x16x16xf32>
    %9 = arith.maximumf %5, %8 : vector<1x16x16xf32>
    %cst_3 = arith.constant 0.000000e+00 : f32
    %10 = vector.broadcast %cst_3 : f32 to vector<1x1x16xf32>
    %11 = vector.extract_strided_slice %9 {offsets = [0, 0, 0], sizes = [1, 15, 16], strides = [1, 1, 1]} : vector<1x16x16xf32> to vector<1x15x16xf32>
    %12 = tpu.concatenate %10, %11 in 1 : vector<1x1x16xf32>, vector<1x15x16xf32> -> vector<1x16x16xf32>
    %13 = arith.maximumf %9, %12 : vector<1x16x16xf32>
    %cst_4 = arith.constant 0.000000e+00 : f32
    %14 = vector.broadcast %cst_4 : f32 to vector<1x1x16xf32>
    %15 = vector.extract_strided_slice %9 {offsets = [0, 1, 0], sizes = [1, 15, 16], strides = [1, 1, 1]} : vector<1x16x16xf32> to vector<1x15x16xf32>
    %16 = tpu.concatenate %15, %14 in 1 : vector<1x15x16xf32>, vector<1x1x16xf32> -> vector<1x16x16xf32>
    %17 = arith.maximumf %13, %16 : vector<1x16x16xf32>
    %cst_5 = arith.constant 1.000000e+00 : f32
    %18 = vector.broadcast %cst_5 : f32 to vector<1x16x16xf32>
    %19 = arith.subf %18, %17 : vector<1x16x16xf32>
    %c0_6 = arith.constant 0 : index
    %c0_7 = arith.constant 0 : index
    %c0_8 = arith.constant 0 : index
    %20 = vector.load %arg2[%c0_6, %c0_7, %c0_8] : memref<1x16x16xf32, #tpu.memory_space<vmem>>, vector<1x16x16xf32>
    tpu.vector_store %arg2[%c0_6, %c0_7, %c0_8], %19 {strides = array<i32>} : memref<1x16x16xf32, #tpu.memory_space<vmem>>, vector<1x16x16xf32>,
    return
  }
  func.func @transform_0(%arg0: i32) -> (i32, i32, i32) {
    %c0_i32 = arith.constant 0 : i32
    %c0_i32_0 = arith.constant 0 : i32
    %c0_i32_1 = arith.constant 0 : i32
    return %arg0, %c0_i32, %c0_i32_0 : i32, i32, i32
  }
  func.func @transform_1(%arg0: i32) -> (i32, i32, i32) {
    %c0_i32 = arith.constant 0 : i32
    %c0_i32_0 = arith.constant 0 : i32
    %c0_i32_1 = arith.constant 0 : i32
    return %arg0, %c0_i32, %c0_i32_0 : i32, i32, i32
  }
}

module attributes {stable_mosaic.version = 11 : i64} {
  func.func @_apply_kernel(%arg0: i32, %arg1: i32, %arg2: memref<1x4x256xf32, #tpu.memory_space<vmem>>, %arg3: memref<1x1x256xf32, #tpu.memory_space<vmem>>, %arg4: memref<1x4x256xf32, #tpu.memory_space<vmem>>) attributes {dimension_semantics = [#tpu.dimension_semantics<parallel>, #tpu.dimension_semantics<parallel>], iteration_bounds = array<i64: 2, 1>, scalar_prefetch = 0 : i64, scratch_operands = 0 : i64, tpu.core_type = #tpu.core_type<tc>, window_params = [{transform_indices = @transform_0, window_bounds = array<i64: 1, 4, 256>}, {transform_indices = @transform_1, window_bounds = array<i64: 1, 1, 256>}, {transform_indices = @transform_2, window_bounds = array<i64: 1, 4, 256>}]} {
    %c0 = arith.constant 0 : index
    %c0_0 = arith.constant 0 : index
    %c0_1 = arith.constant 0 : index
    %0 = vector.load %arg2[%c0, %c0_0, %c0_1] : memref<1x4x256xf32, #tpu.memory_space<vmem>>, vector<1x4x256xf32>
    %c0_2 = arith.constant 0 : index
    %c0_3 = arith.constant 0 : index
    %c0_4 = arith.constant 0 : index
    %1 = vector.load %arg3[%c0_2, %c0_3, %c0_4] : memref<1x1x256xf32, #tpu.memory_space<vmem>>, vector<1x1x256xf32>
    %2 = vector.broadcast %1 : vector<1x1x256xf32> to vector<1x4x256xf32>
    %3 = arith.mulf %0, %2 : vector<1x4x256xf32>
    %c0_5 = arith.constant 0 : index
    %c0_6 = arith.constant 0 : index
    %c0_7 = arith.constant 0 : index
    %4 = vector.load %arg4[%c0_5, %c0_6, %c0_7] : memref<1x4x256xf32, #tpu.memory_space<vmem>>, vector<1x4x256xf32>
    tpu.vector_store %arg4[%c0_5, %c0_6, %c0_7], %3 {strides = array<i32>} : memref<1x4x256xf32, #tpu.memory_space<vmem>>, vector<1x4x256xf32>,
    return
  }
  func.func @transform_0(%arg0: i32, %arg1: i32) -> (i32, i32, i32) {
    %c0_i32 = arith.constant 0 : i32
    %c0_i32_0 = arith.constant 0 : i32
    return %arg0, %arg1, %c0_i32 : i32, i32, i32
  }
  func.func @transform_1(%arg0: i32, %arg1: i32) -> (i32, i32, i32) {
    %c0_i32 = arith.constant 0 : i32
    %c0_i32_0 = arith.constant 0 : i32
    %c0_i32_1 = arith.constant 0 : i32
    return %arg0, %c0_i32, %c0_i32_0 : i32, i32, i32
  }
  func.func @transform_2(%arg0: i32, %arg1: i32) -> (i32, i32, i32) {
    %c0_i32 = arith.constant 0 : i32
    %c0_i32_0 = arith.constant 0 : i32
    return %arg0, %arg1, %c0_i32 : i32, i32, i32
  }
}

</mosaic_0001>

<llo_original>
// kernel: dropblock2d_pallas.3
$region0: #{dropblock2d_pallas.3}
  #allocation0 [shape = 'u32[]', space=smem, size = 0x4, offset = 0x4, fixed_abs, tag = 'smem constant byte address 0x4 - core index']
  #allocation1 [shape = 'u32[72,128]{1,0:T(1,128)}', space=vmem, size = 0x9000, scoped, tag = 'internal scratch']
  %s0 = inlined_call_operand.vmem [shape: f32[2,4,256], index: 0, kind: input, shape index: {}]
  %s1 = inlined_call_operand.vmem [shape: f32[2,1,256], index: 1, kind: input, shape index: {}]
  %s2 = inlined_call_operand.vmem [shape: f32[2,4,256], index: 2, kind: output, shape index: {}]
  %s3 = sld [smem:[#allocation0]]
  $region41: #{dropblock2d_pallas.3} parent=0
    _
  %s5 = ssub.s32 1, %s3
  %s6 = scalar_select 0, %s5, %s3
  loop: start=0, step=1, limit=4
  $region2: #{dropblock2d_pallas.3} parent=0 // loop_pre_header
    _
  $region3: #{dropblock2d_pallas.3} parent=0 // loop_header
    %s8 = sphi 0, %s12
    %p9 = scmp.ge.s32.totalorder %s8, 4
    %s15 = sphi 0, %s27
    %s16 = sphi 0, %s23
    %s17 = sphi 0, %s15
    %s18 = sphi 0, %s16
    %s19 = sphi 0, %s17
    %s20 = sphi 0, %s18
    %s32 = sphi 0, %s34
    %s35 = sphi 0, %s32
    %s36 = sphi 0, %s35
    %s52 = sphi 0, %s36
    %s58 = sphi 0, %s60
    %s61 = sphi 0, %s58
    %s62 = sphi 0, %s61
    %s78 = sphi 0, %s62
    %s86 = sphi 0, %s88
    %s89 = sphi 0, %s86
    %s90 = sphi 0, %s89
    %s106 = sphi 0, %s90
  $region4: #{dropblock2d_pallas.3} parent=0 // loop_header_branch
    %11 = sbr.rel (%p9) target = $region8
  $region5: #{dropblock2d_pallas.3} parent=0 // loop_body
    %s13 = ssub.s32 %s8, 1
    %s14 = ssub.s32 %s8, 2
    %s21 = sadd.s32 1, %s16
    %p22 = scmp.ge.s32.totalorder %s21, 1
    %s23 = scalar_select %p22, 0, %s21
    %s24 = sadd.s32 1, %s15
    %s25 = scalar_select %p22, %s24, %s15
    %p26 = scmp.ge.s32.totalorder %s25, 2
    %s27 = scalar_select %p26, 0, %s25
    %s28 = ssub.s32 %s15, %s27
    %s29 = ssub.s32 %s16, %s23
    %s30 = sor.u32 %s28, %s29
    %p31 = scmp.eq.s32.totalorder %s30, 0
    %s33 = sadd.s32 %s32, 1
    %s34 = scalar_select %p31, %s32, %s33
    %p37 = pneg %p31
    %p38 = scmp.eq.s32.totalorder %s8, 1
    %p39 = por %p37, %p38
    %p40 = scmp.ne.s32.totalorder %s32, %s35
    %p41 = scmp.eq.s32.totalorder %s8, 0
    %p42 = por %p40, %p41
    %p43 = scmp.ne.s32.totalorder %s32, %s35
    %p44 = scmp.eq.s32.totalorder %s13, 1
    %p45 = por %p43, %p44
    %p46 = scmp.ne.s32.totalorder %s35, %s36
    %p47 = scmp.eq.s32.totalorder %s13, 0
    %p48 = por %p46, %p47
    %p49 = scmp.ne.s32.totalorder %s35, %s36
    %p50 = scmp.eq.s32.totalorder %s14, 1
    %p51 = por %p49, %p50
    %p53 = scmp.ne.s32.totalorder %s36, %s52
    %p54 = scmp.eq.s32.totalorder %s14, 0
    %p55 = por %p53, %p54
    %s56 = ssub.s32 %s15, %s27
    %p57 = scmp.eq.s32.totalorder %s56, 0
    %s59 = sadd.s32 %s58, 1
    %s60 = scalar_select %p57, %s58, %s59
    %p63 = pneg %p57
    %p64 = scmp.eq.s32.totalorder %s8, 1
    %p65 = por %p63, %p64
    %p66 = scmp.ne.s32.totalorder %s58, %s61
    %p67 = scmp.eq.s32.totalorder %s8, 0
    %p68 = por %p66, %p67
    %p69 = scmp.ne.s32.totalorder %s58, %s61
    %p70 = scmp.eq.s32.totalorder %s13, 1
    %p71 = por %p69, %p70
    %p72 = scmp.ne.s32.totalorder %s61, %s62
    %p73 = scmp.eq.s32.totalorder %s13, 0
    %p74 = por %p72, %p73
    %p75 = scmp.ne.s32.totalorder %s61, %s62
    %p76 = scmp.eq.s32.totalorder %s14, 1
    %p77 = por %p75, %p76
    %p79 = scmp.ne.s32.totalorder %s62, %s78
    %p80 = scmp.eq.s32.totalorder %s14, 0
    %p81 = por %p79, %p80
    %s82 = ssub.s32 %s15, %s27
    %s83 = ssub.s32 %s16, %s23
    %s84 = sor.u32 %s82, %s83
    %p85 = scmp.eq.s32.totalorder %s84, 0
    %s87 = sadd.s32 %s86, 1
    %s88 = scalar_select %p85, %s86, %s87
    %p91 = pneg %p85
    %p92 = scmp.eq.s32.totalorder %s8, 1
    %p93 = por %p91, %p92
    %p94 = scmp.ne.s32.totalorder %s86, %s89
    %p95 = scmp.eq.s32.totalorder %s8, 0
    %p96 = por %p94, %p95
    %p97 = scmp.ne.s32.totalorder %s86, %s89
    %p98 = scmp.eq.s32.totalorder %s13, 1
    %p99 = por %p97, %p98
    %p100 = scmp.ne.s32.totalorder %s89, %s90
    %p101 = scmp.eq.s32.totalorder %s13, 0
    %p102 = por %p100, %p101
    %p103 = scmp.ne.s32.totalorder %s89, %s90
    %p104 = scmp.eq.s32.totalorder %s14, 1
    %p105 = por %p103, %p104
    %p107 = scmp.ne.s32.totalorder %s90, %s106
    %p108 = scmp.eq.s32.totalorder %s14, 0
    %p109 = por %p107, %p108
    %p110 = scmp.le.s32.totalorder 1, %s8
    %p111 = scmp.lt.s32.totalorder %s8, 3
    %p112 = pnand %p110, %p111
    %p113 = pneg %p112
    // Predicated region
    $region9: #{dropblock2d_pallas.3} parent=5 // pred_check
      _
    $region10: #{dropblock2d_pallas.3} parent=5 // pred_check_branch
      %115 = sbr.rel (%p112) target = $region12
    $region11: #{dropblock2d_pallas.3} parent=5 // pred_region
      %s116 = ssub.s32 %s8, 1
    $region12: #{dropblock2d_pallas.3} parent=5 // pred_fallthru
      _
    %p117 = scmp.lt.s32.totalorder %s8, 2
    // Predicated region
    $region13: #{dropblock2d_pallas.3} parent=5 // pred_check
      %p118 = pneg %p117
    $region14: #{dropblock2d_pallas.3} parent=5 // pred_check_branch
      %120 = sbr.rel (%p118) target = $region16
    $region15: #{dropblock2d_pallas.3} parent=5 // pred_region
      // Predicated region
      $region17: #{dropblock2d_pallas.3} parent=15 // pred_check
        %p121 = pneg %p42
      $region18: #{dropblock2d_pallas.3} parent=15 // pred_check_branch
        %123 = sbr.rel (%p121) target = $region20
      $region19: #{dropblock2d_pallas.3} parent=15 // pred_region
        %p124 = scmp.lt.s32.totalorder %s15, 1
        %s125 = scalar_select %p124, %s15, 1
        %p126 = scmp.lt.s32.totalorder %s16, 0
        %s127 = scalar_select %p126, %s16, 0
        %s128 = smul.addr %s127, 2
        %s129 = smul.addr %s125, 2
        %s130 = sadd.s32 %s128, %s129
        %s131 = smul.addr %s130, 4
        %s132 = scalar_lea.vmem %s0, %s131
      $region20: #{dropblock2d_pallas.3} parent=15 // pred_fallthru
        _
      // Predicated region
      $region21: #{dropblock2d_pallas.3} parent=15 // pred_check
        %p133 = pneg %p68
      $region22: #{dropblock2d_pallas.3} parent=15 // pred_check_branch
        %135 = sbr.rel (%p133) target = $region24
      $region23: #{dropblock2d_pallas.3} parent=15 // pred_region
        %p136 = scmp.lt.s32.totalorder %s15, 1
        %s137 = scalar_select %p136, %s15, 1
        %s138 = smul.addr %s137, 2
        %s139 = scalar_lea.vmem %s1, %s138
      $region24: #{dropblock2d_pallas.3} parent=15 // pred_fallthru
        _
    $region16: #{dropblock2d_pallas.3} parent=5 // pred_fallthru
      _
    %p140 = scmp.le.s32.totalorder 1, %s8
    %p141 = scmp.lt.s32.totalorder %s8, 3
    %p142 = pnand %p140, %p141
    %p143 = pneg %p142
    // Predicated region
    $region25: #{dropblock2d_pallas.3} parent=5 // pred_check
      _
    $region26: #{dropblock2d_pallas.3} parent=5 // pred_check_branch
      %145 = sbr.rel (%p142) target = $region28
    $region27: #{dropblock2d_pallas.3} parent=5 // pred_region
      %s146 = ssub.s32 %s8, 1
      %p147 = scmp.lt.s32.totalorder %s17, 1
      %s148 = scalar_select %p147, %s17, 1
      %p149 = scmp.lt.s32.totalorder %s18, 0
      %s150 = scalar_select %p149, %s18, 0
      %s151 = smul.addr %s150, 2
      %s152 = smul.addr %s148, 2
      %s153 = sadd.s32 %s151, %s152
      %s154 = smul.addr %s153, 4
      %s155 = scalar_lea.vmem %s0, %s154
      %p156 = pneg %p48
      %p157 = pneg %p45
      %p158 = scmp.lt.s32.totalorder %s17, 1
      %s159 = scalar_select %p158, %s17, 1
      %s160 = smul.addr %s159, 2
      %s161 = scalar_lea.vmem %s1, %s160
      %p162 = pneg %p74
      %p163 = pneg %p71
      %p164 = pneg %p102
      %p165 = pneg %p99
      %p166 = scmp.lt.s32.totalorder %s17, 1
      %s167 = scalar_select %p166, %s17, 1
      %p168 = scmp.lt.s32.totalorder %s18, 0
      %s169 = scalar_select %p168, %s18, 0
      %s170 = smul.addr %s169, 2
      %s171 = smul.addr %s167, 2
      %s172 = sadd.s32 %s170, %s171
      %s173 = smul.addr %s172, 4
      %s174 = scalar_lea.vmem %s2, %s173
      %p175 = scmp.lt.s32.totalorder %s17, 1
      %s176 = scalar_select %p175, %s17, 1
      %p177 = scmp.lt.s32.totalorder %s18, 0
      %s178 = scalar_select %p177, %s18, 0
      %s179 = smul.addr %s178, 2
      %s180 = smul.addr %s176, 2
      %s181 = sadd.s32 %s179, %s180
      %s182 = smul.addr %s181, 4
      %s183 = scalar_lea.vmem %s0, %s182
      %p184 = scmp.lt.s32.totalorder %s17, 1
      %s185 = scalar_select %p184, %s17, 1
      %s186 = smul.addr %s185, 2
      %s187 = scalar_lea.vmem %s1, %s186
      %p188 = scmp.lt.s32.totalorder %s17, 1
      %s189 = scalar_select %p188, %s17, 1
      %p190 = scmp.lt.s32.totalorder %s18, 0
      %s191 = scalar_select %p190, %s18, 0
      %s192 = smul.addr %s191, 2
      %s193 = smul.addr %s189, 2
      %s194 = sadd.s32 %s192, %s193
      %s195 = smul.addr %s194, 4
      %s196 = scalar_lea.vmem %s2, %s195
      %v197 = vld [vmem:[%s183] sm:$0xff]
      %v198 = vld [vmem:[%s187] sm:$0x3]
      %v200 = vperm.slane %v198, 0
      %v201 = vperm.slane %v198, 1
      %v202 = vrot.slane %v201, 4
      %vm203 = vcmask 1043456
      %v204 = vsel %vm203, %v200, %v202
      %v206 = vmul.f32 %v197, %v204
      %207 = vst [vmem:[%s196] sm:$0xff] %v206
      %p208 = scmp.lt.s32.totalorder %s17, 1
      %s209 = scalar_select %p208, %s17, 1
      %p210 = scmp.lt.s32.totalorder %s18, 0
      %s211 = scalar_select %p210, %s18, 0
      %s212 = smul.addr %s211, 2
      %s213 = smul.addr %s209, 2
      %s214 = sadd.s32 %s212, %s213
      %s215 = smul.addr %s214, 4
      %s216 = scalar_lea.vmem %s2, %s215
      // Predicated region
      $region29: #{dropblock2d_pallas.3} parent=27 // pred_check
        %p217 = pneg %p99
      $region30: #{dropblock2d_pallas.3} parent=27 // pred_check_branch
        %219 = sbr.rel (%p217) target = $region32
      $region31: #{dropblock2d_pallas.3} parent=27 // pred_region
        _
      $region32: #{dropblock2d_pallas.3} parent=27 // pred_fallthru
        _
    $region28: #{dropblock2d_pallas.3} parent=5 // pred_fallthru
      _
    %p220 = scmp.le.s32.totalorder 2, %s8
    // Predicated region
    $region33: #{dropblock2d_pallas.3} parent=5 // pred_check
      %p221 = pneg %p220
    $region34: #{dropblock2d_pallas.3} parent=5 // pred_check_branch
      %223 = sbr.rel (%p221) target = $region36
    $region35: #{dropblock2d_pallas.3} parent=5 // pred_region
      %s224 = ssub.s32 %s8, 2
      // Predicated region
      $region37: #{dropblock2d_pallas.3} parent=35 // pred_check
        %p225 = pneg %p105
      $region38: #{dropblock2d_pallas.3} parent=35 // pred_check_branch
        %227 = sbr.rel (%p225) target = $region40
      $region39: #{dropblock2d_pallas.3} parent=35 // pred_region
        %p228 = scmp.lt.s32.totalorder %s19, 1
        %s229 = scalar_select %p228, %s19, 1
        %p230 = scmp.lt.s32.totalorder %s20, 0
        %s231 = scalar_select %p230, %s20, 0
        %s232 = smul.addr %s231, 2
        %s233 = smul.addr %s229, 2
        %s234 = sadd.s32 %s232, %s233
        %s235 = smul.addr %s234, 4
        %s236 = scalar_lea.vmem %s2, %s235
      $region40: #{dropblock2d_pallas.3} parent=35 // pred_fallthru
        _
    $region36: #{dropblock2d_pallas.3} parent=5 // pred_fallthru
      _
  $region6: #{dropblock2d_pallas.3} parent=0 // loop_footer
    %s12 = sadd.s32 1, %s8
  $region7: #{dropblock2d_pallas.3} parent=0 // loop_footer_branch
    %7 = sbr.rel target = $region3
  $region8: #{dropblock2d_pallas.3} parent=0 // loop_exit
    _

// kernel: dropblock2d_pallas.2
$region0: #{dropblock2d_pallas.2}
  #allocation0 [shape = 'u32[]', space=smem, size = 0x4, offset = 0x4, fixed_abs, tag = 'smem constant byte address 0x4 - core index']
  #allocation1 [shape = 'u32[72,128]{1,0:T(1,128)}', space=vmem, size = 0x9000, scoped, tag = 'internal scratch']
  %s0 = inlined_call_operand.vmem [shape: s8[2,16,16], index: 0, kind: input, shape index: {}]
  %s1 = inlined_call_operand.vmem [shape: f32[2,16,16], index: 1, kind: output, shape index: {}]
  %s2 = sld [smem:[#allocation0]]
  $region37: #{dropblock2d_pallas.2} parent=0
    _
  %s4 = ssub.s32 1, %s2
  %s5 = scalar_select 0, %s4, %s2
  loop: start=0, step=1, limit=4
  $region2: #{dropblock2d_pallas.2} parent=0 // loop_pre_header
    _
  $region3: #{dropblock2d_pallas.2} parent=0 // loop_header
    %s7 = sphi 0, %s11
    %p8 = scmp.ge.s32.totalorder %s7, 4
    %s17 = sphi 0, %s19
    %s20 = sphi 0, %s17
    %s21 = sphi 0, %s20
    %s37 = sphi 0, %s21
    %s43 = sphi 0, %s45
    %s46 = sphi 0, %s43
    %s47 = sphi 0, %s46
    %s63 = sphi 0, %s47
  $region4: #{dropblock2d_pallas.2} parent=0 // loop_header_branch
    %10 = sbr.rel (%p8) target = $region8
  $region5: #{dropblock2d_pallas.2} parent=0 // loop_body
    %s12 = ssub.s32 %s7, 1
    %s13 = ssub.s32 %s7, 2
    %s14 = sadd.s32 %s7, 1
    %s15 = ssub.s32 %s7, %s14
    %p16 = scmp.eq.s32.totalorder %s15, 0
    %s18 = sadd.s32 %s17, 1
    %s19 = scalar_select %p16, %s17, %s18
    %p22 = pneg %p16
    %p23 = scmp.eq.s32.totalorder %s7, 1
    %p24 = por %p22, %p23
    %p25 = scmp.ne.s32.totalorder %s17, %s20
    %p26 = scmp.eq.s32.totalorder %s7, 0
    %p27 = por %p25, %p26
    %p28 = scmp.ne.s32.totalorder %s17, %s20
    %p29 = scmp.eq.s32.totalorder %s12, 1
    %p30 = por %p28, %p29
    %p31 = scmp.ne.s32.totalorder %s20, %s21
    %p32 = scmp.eq.s32.totalorder %s12, 0
    %p33 = por %p31, %p32
    %p34 = scmp.ne.s32.totalorder %s20, %s21
    %p35 = scmp.eq.s32.totalorder %s13, 1
    %p36 = por %p34, %p35
    %p38 = scmp.ne.s32.totalorder %s21, %s37
    %p39 = scmp.eq.s32.totalorder %s13, 0
    %p40 = por %p38, %p39
    %s41 = ssub.s32 %s7, %s14
    %p42 = scmp.eq.s32.totalorder %s41, 0
    %s44 = sadd.s32 %s43, 1
    %s45 = scalar_select %p42, %s43, %s44
    %p48 = pneg %p42
    %p49 = scmp.eq.s32.totalorder %s7, 1
    %p50 = por %p48, %p49
    %p51 = scmp.ne.s32.totalorder %s43, %s46
    %p52 = scmp.eq.s32.totalorder %s7, 0
    %p53 = por %p51, %p52
    %p54 = scmp.ne.s32.totalorder %s43, %s46
    %p55 = scmp.eq.s32.totalorder %s12, 1
    %p56 = por %p54, %p55
    %p57 = scmp.ne.s32.totalorder %s46, %s47
    %p58 = scmp.eq.s32.totalorder %s12, 0
    %p59 = por %p57, %p58
    %p60 = scmp.ne.s32.totalorder %s46, %s47
    %p61 = scmp.eq.s32.totalorder %s13, 1
    %p62 = por %p60, %p61
    %p64 = scmp.ne.s32.totalorder %s47, %s63
    %p65 = scmp.eq.s32.totalorder %s13, 0
    %p66 = por %p64, %p65
    %p67 = scmp.le.s32.totalorder 1, %s7
    %p68 = scmp.lt.s32.totalorder %s7, 3
    %p69 = pnand %p67, %p68
    %p70 = pneg %p69
    // Predicated region
    $region9: #{dropblock2d_pallas.2} parent=5 // pred_check
      _
    $region10: #{dropblock2d_pallas.2} parent=5 // pred_check_branch
      %72 = sbr.rel (%p69) target = $region12
    $region11: #{dropblock2d_pallas.2} parent=5 // pred_region
      %s73 = ssub.s32 %s7, 1
    $region12: #{dropblock2d_pallas.2} parent=5 // pred_fallthru
      _
    %p74 = scmp.lt.s32.totalorder %s7, 2
    // Predicated region
    $region13: #{dropblock2d_pallas.2} parent=5 // pred_check
      %p75 = pneg %p74
    $region14: #{dropblock2d_pallas.2} parent=5 // pred_check_branch
      %77 = sbr.rel (%p75) target = $region16
    $region15: #{dropblock2d_pallas.2} parent=5 // pred_region
      // Predicated region
      $region17: #{dropblock2d_pallas.2} parent=15 // pred_check
        %p78 = pneg %p27
      $region18: #{dropblock2d_pallas.2} parent=15 // pred_check_branch
        %80 = sbr.rel (%p78) target = $region20
      $region19: #{dropblock2d_pallas.2} parent=15 // pred_region
        %p81 = scmp.lt.s32.totalorder %s7, 1
        %s82 = scalar_select %p81, %s7, 1
        %s83 = smul.addr %s82, 2
        %s84 = smul.addr %s83, 2
        %s85 = scalar_lea.vmem %s0, %s84
      $region20: #{dropblock2d_pallas.2} parent=15 // pred_fallthru
        _
    $region16: #{dropblock2d_pallas.2} parent=5 // pred_fallthru
      _
    %p86 = scmp.le.s32.totalorder 1, %s7
    %p87 = scmp.lt.s32.totalorder %s7, 3
    %p88 = pnand %p86, %p87
    %p89 = pneg %p88
    // Predicated region
    $region21: #{dropblock2d_pallas.2} parent=5 // pred_check
      _
    $region22: #{dropblock2d_pallas.2} parent=5 // pred_check_branch
      %91 = sbr.rel (%p88) target = $region24
    $region23: #{dropblock2d_pallas.2} parent=5 // pred_region
      %s92 = ssub.s32 %s7, 1
      %p93 = scmp.lt.s32.totalorder %s12, 1
      %s94 = scalar_select %p93, %s12, 1
      %s95 = smul.addr %s94, 2
      %s96 = smul.addr %s95, 2
      %s97 = scalar_lea.vmem %s0, %s96
      %p98 = pneg %p33
      %p99 = pneg %p30
      %p100 = pneg %p59
      %p101 = pneg %p56
      %p102 = scmp.lt.s32.totalorder %s12, 1
      %s103 = scalar_select %p102, %s12, 1
      %s104 = smul.addr %s103, 2
      %s105 = smul.addr %s104, 8
      %s106 = scalar_lea.vmem %s1, %s105
      %p107 = scmp.lt.s32.totalorder %s12, 1
      %s108 = scalar_select %p107, %s12, 1
      %s109 = smul.addr %s108, 2
      %s110 = smul.addr %s109, 2
      %s111 = scalar_lea.vmem %s0, %s110
      %p112 = scmp.lt.s32.totalorder %s12, 1
      %s113 = scalar_select %p112, %s12, 1
      %s114 = smul.addr %s113, 2
      %s115 = smul.addr %s114, 8
      %s116 = scalar_lea.vmem %s1, %s115
      %v117 = vld [vmem:[%s111] sm:$0x3]
      %v118 = vld [vmem:[%s111 + $0x2] sm:$0x3]
      %v119 = vunpack.c.0.s8 %v117
      %v120 = vunpack.c.0.s8 %v118
      %v121 = vcvt.s32.f32 %v119
      %v122 = vcvt.s32.f32 %v120
      %125 = vrot.lane.b32.xlu0 %v121, 1
      %v126 = vpop.permute.xlu0 %125
      %127 = vrot.lane.b32.xlu0 %v122, 1
      %v128 = vpop.permute.xlu0 %127
      %vm131 = vcmask 7168
      %v132 = vsel %vm131, 0.0, %v126
      %v133 = vsel %vm131, 0.0, %v128
      %v134 = vmax.f32 %v121, %v132
      %v135 = vmax.f32 %v122, %v133
      %136 = vrot.lane.b32.xlu0 %v121, 127
      %v137 = vpop.permute.xlu0 %136
      %138 = vrot.lane.b32.xlu0 %v122, 127
      %v139 = vpop.permute.xlu0 %138
      %vm142 = vcmask 121856
      %v143 = vsel %vm142, %v137, 0.0
      %v144 = vsel %vm142, %v139, 0.0
      %v145 = vmax.f32 %v134, %v143
      %v146 = vmax.f32 %v135, %v144
      %vm149 = vcmask 1040384
      %v150 = vrot.slane %v145, 7
      %v151 = vrot.slane %v146, 7
      %v152 = vsel %vm149, %v150, %v151
      %v155 = vsel %vm149, 0.0, %v150
      %v156 = vmax.f32 %v145, %v155
      %v157 = vmax.f32 %v146, %v152
      %vm158 = vcmask 1046528
      %v159 = vrot.slane %v145, 1
      %v160 = vrot.slane %v146, 1
      %v161 = vsel %vm158, %v159, %v160
      %v164 = vsel %vm158, %v160, 0.0
      %v165 = vmax.f32 %v156, %v161
      %v166 = vmax.f32 %v157, %v164
      %v167 = vsub.f32 1.0, %v165
      %v168 = vsub.f32 1.0, %v166
      %vm169 = vcmask 130048
      %170 = vst.msk [vmem:[%s116] sm:$0xff] %vm169, %v167
      %171 = vst.msk [vmem:[%s116 + $0x8] sm:$0xff] %vm169, %v168
      %p172 = scmp.lt.s32.totalorder %s12, 1
      %s173 = scalar_select %p172, %s12, 1
      %s174 = smul.addr %s173, 2
      %s175 = smul.addr %s174, 8
      %s176 = scalar_lea.vmem %s1, %s175
      // Predicated region
      $region25: #{dropblock2d_pallas.2} parent=23 // pred_check
        %p177 = pneg %p56
      $region26: #{dropblock2d_pallas.2} parent=23 // pred_check_branch
        %179 = sbr.rel (%p177) target = $region28
      $region27: #{dropblock2d_pallas.2} parent=23 // pred_region
        _
      $region28: #{dropblock2d_pallas.2} parent=23 // pred_fallthru
        _
    $region24: #{dropblock2d_pallas.2} parent=5 // pred_fallthru
      _
    %p180 = scmp.le.s32.totalorder 2, %s7
    // Predicated region
    $region29: #{dropblock2d_pallas.2} parent=5 // pred_check
      %p181 = pneg %p180
    $region30: #{dropblock2d_pallas.2} parent=5 // pred_check_branch
      %183 = sbr.rel (%p181) target = $region32
    $region31: #{dropblock2d_pallas.2} parent=5 // pred_region
      %s184 = ssub.s32 %s7, 2
      // Predicated region
      $region33: #{dropblock2d_pallas.2} parent=31 // pred_check
        %p185 = pneg %p62
      $region34: #{dropblock2d_pallas.2} parent=31 // pred_check_branch
        %187 = sbr.rel (%p185) target = $region36
      $region35: #{dropblock2d_pallas.2} parent=31 // pred_region
        %p188 = scmp.lt.s32.totalorder %s13, 1
        %s189 = scalar_select %p188, %s13, 1
        %s190 = smul.addr %s189, 2
        %s191 = smul.addr %s190, 8
        %s192 = scalar_lea.vmem %s1, %s191
      $region36: #{dropblock2d_pallas.2} parent=31 // pred_fallthru
        _
    $region32: #{dropblock2d_pallas.2} parent=5 // pred_fallthru
      _
  $region6: #{dropblock2d_pallas.2} parent=0 // loop_footer
    %s11 = sadd.s32 1, %s7
  $region7: #{dropblock2d_pallas.2} parent=0 // loop_footer_branch
    %6 = sbr.rel target = $region3
  $region8: #{dropblock2d_pallas.2} parent=0 // loop_exit
    _

</llo_original>
